<compile_context>
chip_gen: v7x
topology: tpu7x:2x2x1
jax: 0.10.0
libtpu: 0.0.40
codegen_flags: <defaults>
</compile_context>

<pallas_src>
import math
import jax
import jax.numpy as jnp
from jax.experimental import pallas as pl
from jax.experimental.pallas import tpu as pltpu


def _make_fused_conv_gelu_kernel(NB, L, C_in, C_out_total, Kmax):
    """Fused kernel: NB batch rows per step, all branches in one im2col matmul."""
    pad_max = (Kmax - 1) // 2
    R = NB * L  # rows per grid step

    def kernel(x_ref, w_ref, b_ref, o_ref):
        # x_ref: (R, C_in)                 f32, NB batch elements stacked along rows
        # w_ref: (Kmax*C_in, C_out_total)  bf16 fused per-tap weights (zero-padded taps)
        # b_ref: (1, C_out_total)          f32 fused bias
        # o_ref: (R, C_out_total)          f32 output slab
        x = x_ref[...]  # (R, C_in) f32
        # Position within each batch element (for zero-padding the conv edges).
        pos = jax.lax.broadcasted_iota(jnp.int32, (R, C_in), 0) % L

        cols = []
        for d in range(-pad_max, pad_max + 1):
            if d == 0:
                cols.append(x)
            else:
                # shifted[l] = x[l + d] within the same batch element, else 0.
                rolled = pltpu.roll(x, shift=(-d) % R, axis=0)
                valid = jnp.logical_and(pos + d >= 0, pos + d < L)
                cols.append(jnp.where(valid, rolled, 0.0))
        xim = jnp.concatenate(cols, axis=-1)          # (R, Kmax*C_in) f32 im2col slab

        acc = jnp.dot(xim.astype(jnp.bfloat16), w_ref[...],
                      preferred_element_type=jnp.float32)   # (R, C_out_total) f32
        acc = acc + b_ref[...]
        # GeLU exactly as in the PyTorch module (tanh approximation), in f32.
        y = 0.5 * acc * (1.0 + jnp.tanh(acc * 0.7978845608 * (1.0 + 0.044715 * acc * acc)))
        o_ref[...] = y.astype(o_ref.dtype)

    return kernel


def conv1d_module_forward(x_ncl, weights_pt, biases, kernel_sizes):
    """Reproduces Conv1d.forward: cat of per-kernel-size (conv -> GeLU) along dim=-1.

    x_ncl:      (N, C_in, L) f32
    weights_pt: list of (C_out_per, C_in, k) f32  (PyTorch Conv1d weight layout)
    biases:     list of (C_out_per,) f32
    """
    N, C_in, L = x_ncl.shape
    n_branch = len(kernel_sizes)
    C_out_per = weights_pt[0].shape[0]
    C_out_total = C_out_per * n_branch
    Kmax = max(kernel_sizes)
    pad_max = (Kmax - 1) // 2

    # --- Fuse all branch weights into one (Kmax*C_in, C_out_total) matrix (bf16). ---
    # Fused tap t corresponds to input offset d = t - pad_max; a branch with kernel
    # size k only contributes taps with |d| <= (k-1)//2, others stay zero.
    w_fused = jnp.zeros((Kmax, C_in, C_out_total), jnp.float32)
    for j, (k, w) in enumerate(zip(kernel_sizes, weights_pt)):
        pad = (k - 1) // 2
        w_taps = jnp.transpose(w, (2, 1, 0))  # (k, C_in, C_out_per)
        w_fused = w_fused.at[pad_max - pad:pad_max + pad + 1, :,
                             j * C_out_per:(j + 1) * C_out_per].set(w_taps)
    w_fused = w_fused.reshape(Kmax * C_in, C_out_total).astype(jnp.bfloat16)
    b_fused = jnp.concatenate(biases).reshape(1, C_out_total).astype(jnp.float32)

    # --- Single layout prep: NCL -> (N*L, C_in) row slab. ---
    x_2d = jnp.transpose(x_ncl, (0, 2, 1)).reshape(N * L, C_in)

    # --- Batch blocking: at most 2 "parallel" grid steps (feeds both v7x TCs), ---
    # --- whole batch folded into the block otherwise.                          ---
    if N % 2 == 0 and ((N // 2) * L) % 8 == 0:
        NB = N // 2
    else:
        NB = N
    grid = (N // NB,)
    R = NB * L

    out2d = pl.pallas_call(
        _make_fused_conv_gelu_kernel(NB, L, C_in, C_out_total, Kmax),
        out_shape=jax.ShapeDtypeStruct((N * L, C_out_total), jnp.float32),
        grid=grid,
        in_specs=[
            pl.BlockSpec((R, C_in), lambda i: (i, 0)),
            pl.BlockSpec((Kmax * C_in, C_out_total), lambda i: (0, 0)),
            pl.BlockSpec((1, C_out_total), lambda i: (0, 0)),
        ],
        out_specs=pl.BlockSpec((R, C_out_total), lambda i: (i, 0)),
        compiler_params=pltpu.CompilerParams(dimension_semantics=("parallel",)),
    )(x_2d, w_fused, b_fused)

    # --- One layout fixup to torch.cat(dim=-1) semantics: (N, C_out_per, n_branch*L). ---
    # out2d[n*L + l, j*C_out_per + c] == GeLU(conv_j(x))[n, c, l]
    out = out2d.reshape(N, L, n_branch, C_out_per)
    out = jnp.transpose(out, (0, 3, 2, 1)).reshape(N, C_out_per, n_branch * L)
    return out


def _reference_forward(x_ncl, weights_pt, biases, kernel_sizes):
    """Pure-JAX (f32) reference matching the PyTorch module."""
    outs = []
    for w, b, k in zip(weights_pt, biases, kernel_sizes):
        pad = (k - 1) // 2
        y = jax.lax.conv_general_dilated(
            x_ncl, w, window_strides=(1,), padding=[(pad, pad)],
            dimension_numbers=("NCH", "OIH", "NCH"))
        y = y + b[None, :, None]
        y = 0.5 * y * (1.0 + jnp.tanh(y * 0.7978845608 * (1.0 + 0.044715 * y * y)))
        outs.append(y)
    return jnp.concatenate(outs, axis=-1)


if __name__ == "__main__":
    key = jax.random.PRNGKey(0)

    # Small shapes consistent with the module: x is (N, in_channels, L).
    N, C_in, L = 2, 32, 16
    out_channels = 64
    kernel_sizes = (1, 3)
    assert all(k % 2 == 1 for k in kernel_sizes)
    assert out_channels % len(kernel_sizes) == 0
    C_out_per = out_channels // len(kernel_sizes)

    keys = jax.random.split(key, len(kernel_sizes) + 1)
    x = jax.random.normal(keys[0], (N, C_in, L), jnp.float32)

    # Deterministic parameter init matching the PyTorch __init__:
    #   weight ~ Normal(0, sqrt(2 / (in_channels * kernel_size))), bias = 0.
    weights, biases = [], []
    for i, ksz in enumerate(kernel_sizes):
        std = math.sqrt(2.0 / (C_in * ksz))
        weights.append(std * jax.random.normal(keys[i + 1], (C_out_per, C_in, ksz), jnp.float32))
        biases.append(jnp.zeros((C_out_per,), jnp.float32))

    out = conv1d_module_forward(x, weights, biases, kernel_sizes)
    jax.block_until_ready(out)
    assert out.shape == (N, C_out_per, L * len(kernel_sizes)), out.shape

    # Numerical check vs f32 reference (bf16 MXU inputs -> small, bounded drift).
    ref = _reference_forward(x, weights, biases, kernel_sizes)
    assert jnp.allclose(out, ref, atol=5e-2, rtol=5e-2), float(jnp.max(jnp.abs(out - ref)))

    print("KERNEL_OK")
</pallas_src>

<mosaic_0001>
module attributes {stable_mosaic.version = 11 : i64} {
  func.func @kernel(%arg0: i32, %arg1: memref<16x32xf32, #tpu.memory_space<vmem>>, %arg2: memref<96x64xbf16, #tpu.memory_space<vmem>>, %arg3: memref<1x64xf32, #tpu.memory_space<vmem>>, %arg4: memref<16x64xf32, #tpu.memory_space<vmem>>) attributes {dimension_semantics = [#tpu.dimension_semantics<parallel>], iteration_bounds = array<i64: 2>, scalar_prefetch = 0 : i64, scratch_operands = 0 : i64, tpu.core_type = #tpu.core_type<tc>, window_params = [{transform_indices = @transform_0, window_bounds = array<i64: 16, 32>}, {pipeline_mode = #tpu.pipeline_mode<synchronous>, transform_indices = @transform_1, window_bounds = array<i64: 96, 64>}, {pipeline_mode = #tpu.pipeline_mode<synchronous>, transform_indices = @transform_2, window_bounds = array<i64: 1, 64>}, {transform_indices = @transform_3, window_bounds = array<i64: 16, 64>}]} {
    %c0 = arith.constant 0 : index
    %c0_0 = arith.constant 0 : index
    %0 = vector.load %arg1[%c0, %c0_0] : memref<16x32xf32, #tpu.memory_space<vmem>>, vector<16x32xf32>
    %1 = tpu.iota {dimensions = array<i32: 0>} : vector<16x32xi32>
    %c16_i32 = arith.constant 16 : i32
    %c0_i32 = arith.constant 0 : i32
    %2 = arith.cmpi eq, %c16_i32, %c0_i32 : i32
    %c1_i32 = arith.constant 1 : i32
    %3 = arith.select %2, %c1_i32, %c16_i32 : i32
    %4 = vector.broadcast %3 : i32 to vector<16x32xi32>
    %5 = arith.remsi %1, %4 : vector<16x32xi32>
    %c0_i32_1 = arith.constant 0 : i32
    %6 = vector.broadcast %c0_i32_1 : i32 to vector<16x32xi32>
    %7 = arith.cmpi ne, %5, %6 : vector<16x32xi32>
    %c0_i32_2 = arith.constant 0 : i32
    %8 = vector.broadcast %c0_i32_2 : i32 to vector<16x32xi32>
    %9 = arith.cmpi slt, %5, %8 : vector<16x32xi32>
    %c0_i32_3 = arith.constant 0 : i32
    %10 = arith.cmpi slt, %3, %c0_i32_3 : i32
    %11 = vector.broadcast %10 : i1 to vector<16x32xi1>
    %12 = vector.broadcast %11 : vector<16x32xi1> to vector<16x32xi1>
    %13 = arith.xori %9, %12 : vector<16x32xi1>
    %14 = arith.andi %13, %7 : vector<16x32xi1>
    %15 = vector.broadcast %3 : i32 to vector<16x32xi32>
    %16 = arith.addi %5, %15 : vector<16x32xi32>
    %17 = arith.select %14, %16, %5 : vector<16x32xi1>, vector<16x32xi32>
    %c1_i32_4 = arith.constant 1 : i32
    %18 = tpu.dynamic_rotate %0 by %c1_i32_4 dim 0 : vector<16x32xf32>, i32 -> vector<16x32xf32>
    %c-1_i32 = arith.constant -1 : i32
    %19 = vector.broadcast %c-1_i32 : i32 to vector<16x32xi32>
    %20 = arith.addi %17, %19 : vector<16x32xi32>
    %c0_i32_5 = arith.constant 0 : i32
    %21 = vector.broadcast %c0_i32_5 : i32 to vector<16x32xi32>
    %22 = arith.cmpi sge, %20, %21 : vector<16x32xi32>
    %c-1_i32_6 = arith.constant -1 : i32
    %23 = vector.broadcast %c-1_i32_6 : i32 to vector<16x32xi32>
    %24 = arith.addi %17, %23 : vector<16x32xi32>
    %c16_i32_7 = arith.constant 16 : i32
    %25 = vector.broadcast %c16_i32_7 : i32 to vector<16x32xi32>
    %26 = arith.cmpi slt, %24, %25 : vector<16x32xi32>
    %27 = arith.andi %22, %26 : vector<16x32xi1>
    %cst = arith.constant 0.000000e+00 : f32
    %28 = vector.broadcast %cst : f32 to vector<16x32xf32>
    %29 = arith.select %27, %18, %28 : vector<16x32xi1>, vector<16x32xf32>
    %c15_i32 = arith.constant 15 : i32
    %30 = tpu.dynamic_rotate %0 by %c15_i32 dim 0 : vector<16x32xf32>, i32 -> vector<16x32xf32>
    %c1_i32_8 = arith.constant 1 : i32
    %31 = vector.broadcast %c1_i32_8 : i32 to vector<16x32xi32>
    %32 = arith.addi %17, %31 : vector<16x32xi32>
    %c0_i32_9 = arith.constant 0 : i32
    %33 = vector.broadcast %c0_i32_9 : i32 to vector<16x32xi32>
    %34 = arith.cmpi sge, %32, %33 : vector<16x32xi32>
    %c1_i32_10 = arith.constant 1 : i32
    %35 = vector.broadcast %c1_i32_10 : i32 to vector<16x32xi32>
    %36 = arith.addi %17, %35 : vector<16x32xi32>
    %c16_i32_11 = arith.constant 16 : i32
    %37 = vector.broadcast %c16_i32_11 : i32 to vector<16x32xi32>
    %38 = arith.cmpi slt, %36, %37 : vector<16x32xi32>
    %39 = arith.andi %34, %38 : vector<16x32xi1>
    %cst_12 = arith.constant 0.000000e+00 : f32
    %40 = vector.broadcast %cst_12 : f32 to vector<16x32xf32>
    %41 = arith.select %39, %30, %40 : vector<16x32xi1>, vector<16x32xf32>
    %42 = tpu.concatenate %29, %0, %41 in 1 : vector<16x32xf32>, vector<16x32xf32>, vector<16x32xf32> -> vector<16x96xf32>
    %43 = arith.truncf %42 : vector<16x96xf32> to vector<16x96xbf16>
    %c0_13 = arith.constant 0 : index
    %c0_14 = arith.constant 0 : index
    %44 = vector.load %arg2[%c0_13, %c0_14] : memref<96x64xbf16, #tpu.memory_space<vmem>>, vector<96x64xbf16>
    %cst_15 = arith.constant dense<0.000000e+00> : vector<16x64xf32>
    %45 = tpu.matmul %43, %44, %cst_15 {dimension_numbers = #tpu.dot_dimension_numbers<[1], [0], [0], [1], [0, 0, 1, 1], [], []>} : vector<16x96xbf16>, vector<96x64xbf16>, vector<16x64xf32> -> vector<16x64xf32>
    %c0_16 = arith.constant 0 : index
    %c0_17 = arith.constant 0 : index
    %46 = vector.load %arg3[%c0_16, %c0_17] : memref<1x64xf32, #tpu.memory_space<vmem>>, vector<1x64xf32>
    %47 = vector.broadcast %46 : vector<1x64xf32> to vector<16x64xf32>
    %48 = arith.addf %45, %47 : vector<16x64xf32>
    %cst_18 = arith.constant 5.000000e-01 : f32
    %49 = vector.broadcast %cst_18 : f32 to vector<16x64xf32>
    %50 = arith.mulf %49, %48 : vector<16x64xf32>
    %cst_19 = arith.constant 0.797884583 : f32
    %51 = vector.broadcast %cst_19 : f32 to vector<16x64xf32>
    %52 = arith.mulf %48, %51 : vector<16x64xf32>
    %cst_20 = arith.constant 4.471500e-02 : f32
    %53 = vector.broadcast %cst_20 : f32 to vector<16x64xf32>
    %54 = arith.mulf %53, %48 : vector<16x64xf32>
    %55 = arith.mulf %54, %48 : vector<16x64xf32>
    %cst_21 = arith.constant 1.000000e+00 : f32
    %56 = vector.broadcast %cst_21 : f32 to vector<16x64xf32>
    %57 = arith.addf %56, %55 : vector<16x64xf32>
    %58 = arith.mulf %52, %57 : vector<16x64xf32>
    %59 = math.tanh %58 : vector<16x64xf32>
    %cst_22 = arith.constant 1.000000e+00 : f32
    %60 = vector.broadcast %cst_22 : f32 to vector<16x64xf32>
    %61 = arith.addf %60, %59 : vector<16x64xf32>
    %62 = arith.mulf %50, %61 : vector<16x64xf32>
    %c0_23 = arith.constant 0 : index
    %c0_24 = arith.constant 0 : index
    %63 = vector.load %arg4[%c0_23, %c0_24] : memref<16x64xf32, #tpu.memory_space<vmem>>, vector<16x64xf32>
    tpu.vector_store %arg4[%c0_23, %c0_24], %62 {strides = array<i32>} : memref<16x64xf32, #tpu.memory_space<vmem>>, vector<16x64xf32>,
    return
  }
  func.func @transform_0(%arg0: i32) -> (i32, i32) {
    %c0_i32 = arith.constant 0 : i32
    %c0_i32_0 = arith.constant 0 : i32
    return %arg0, %c0_i32 : i32, i32
  }
  func.func @transform_1(%arg0: i32) -> (i32, i32) {
    %c0_i32 = arith.constant 0 : i32
    %c0_i32_0 = arith.constant 0 : i32
    %c0_i32_1 = arith.constant 0 : i32
    return %c0_i32, %c0_i32_0 : i32, i32
  }
  func.func @transform_2(%arg0: i32) -> (i32, i32) {
    %c0_i32 = arith.constant 0 : i32
    %c0_i32_0 = arith.constant 0 : i32
    %c0_i32_1 = arith.constant 0 : i32
    return %c0_i32, %c0_i32_0 : i32, i32
  }
  func.func @transform_3(%arg0: i32) -> (i32, i32) {
    %c0_i32 = arith.constant 0 : i32
    %c0_i32_0 = arith.constant 0 : i32
    return %arg0, %c0_i32 : i32, i32
  }
}

</mosaic_0001>

<llo_original>
// kernel: tpu_custom_call.1
$region0: #{tpu_custom_call.1}
  #allocation0 [shape = 'u32[]', space=smem, size = 0x4, offset = 0x4, fixed_abs, tag = 'smem constant byte address 0x4 - core index']
  #allocation1 [shape = 'u32[144,128]{1,0:T(1,128)}', space=vmem, size = 0x12000, scoped, tag = 'internal scratch']
  %s0 = inlined_call_operand.vmem [shape: f32[32,32], index: 0, kind: input, shape index: {}]
  %s1 = inlined_call_operand.vmem [shape: bf16[96,64], index: 1, kind: input, shape index: {}]
  %s2 = inlined_call_operand.vmem [shape: f32[1,64], index: 2, kind: input, shape index: {}]
  %s3 = inlined_call_operand.hbm [shape: f32[32,64], index: 3, kind: output, shape index: {}]
  %s4 = sld [smem:[#allocation0]]
  $region45: #{tpu_custom_call.1} parent=0
    _
  %s6 = ssub.s32 1, %s4
  %s7 = scalar_select 0, %s6, %s4
  $region1: #{tpu_custom_call.1} parent=0
    #allocation2 [shape = 'u8[16384]{0}', space=vmem, size = 0x4000, scoped, tag = 'output window, operand 0']
    #allocation3 [shape = 's32[2]{0}', space=sflag, size = 0x8, scoped, tag = 'scoped memory for tpu_custom_call.1']
    %8 = vsyncpa [#allocation3], 0
    %s9 = scalar_lea.sflag [#allocation3], 1
    %10 = vsyncpa %s9, 0
    loop: start=0, step=1, limit=4
    $region2: #{tpu_custom_call.1} parent=1 // loop_pre_header
      _
    $region3: #{tpu_custom_call.1} parent=1 // loop_header
      %s12 = sphi 0, %s16
      %p13 = scmp.ge.s32.totalorder %s12, 4
      %s22 = sphi 0, %s24
      %s25 = sphi 0, %s22
      %s26 = sphi 0, %s25
      %s42 = sphi 0, %s26
      %s46 = sphi 0, %s46
      %s48 = sphi 0, %s46
      %s49 = sphi 0, %s48
      %s63 = sphi 0, %s49
      %s67 = sphi 0, %s67
      %s69 = sphi 0, %s67
      %s70 = sphi 0, %s69
      %s84 = sphi 0, %s70
      %s90 = sphi 0, %s92
      %s93 = sphi 0, %s90
      %s94 = sphi 0, %s93
      %s110 = sphi 0, %s94
    $region4: #{tpu_custom_call.1} parent=1 // loop_header_branch
      %15 = sbr.rel (%p13) target = $region8
    $region5: #{tpu_custom_call.1} parent=1 // loop_body
      %s17 = ssub.s32 %s12, 1
      %s18 = ssub.s32 %s12, 2
      %s19 = sadd.s32 %s12, 1
      %s20 = ssub.s32 %s12, %s19
      %p21 = scmp.eq.s32.totalorder %s20, 0
      %s23 = sadd.s32 %s22, 1
      %s24 = scalar_select %p21, %s22, %s23
      %p27 = pneg %p21
      %p28 = scmp.eq.s32.totalorder %s12, 1
      %p29 = por %p27, %p28
      %p30 = scmp.ne.s32.totalorder %s22, %s25
      %p31 = scmp.eq.s32.totalorder %s12, 0
      %p32 = por %p30, %p31
      %p33 = scmp.ne.s32.totalorder %s22, %s25
      %p34 = scmp.eq.s32.totalorder %s17, 1
      %p35 = por %p33, %p34
      %p36 = scmp.ne.s32.totalorder %s25, %s26
      %p37 = scmp.eq.s32.totalorder %s17, 0
      %p38 = por %p36, %p37
      %p39 = scmp.ne.s32.totalorder %s25, %s26
      %p40 = scmp.eq.s32.totalorder %s18, 1
      %p41 = por %p39, %p40
      %p43 = scmp.ne.s32.totalorder %s26, %s42
      %p44 = scmp.eq.s32.totalorder %s18, 0
      %p45 = por %p43, %p44
      %s47 = sadd.s32 %s46, 1
      %p50 = scmp.eq.s32.totalorder %s12, 1
      %p51 = scmp.ne.s32.totalorder %s46, %s48
      %p52 = scmp.eq.s32.totalorder %s12, 0
      %p53 = por %p51, %p52
      %p54 = scmp.ne.s32.totalorder %s46, %s48
      %p55 = scmp.eq.s32.totalorder %s17, 1
      %p56 = por %p54, %p55
      %p57 = scmp.ne.s32.totalorder %s48, %s49
      %p58 = scmp.eq.s32.totalorder %s17, 0
      %p59 = por %p57, %p58
      %p60 = scmp.ne.s32.totalorder %s48, %s49
      %p61 = scmp.eq.s32.totalorder %s18, 1
      %p62 = por %p60, %p61
      %p64 = scmp.ne.s32.totalorder %s49, %s63
      %p65 = scmp.eq.s32.totalorder %s18, 0
      %p66 = por %p64, %p65
      %s68 = sadd.s32 %s67, 1
      %p71 = scmp.eq.s32.totalorder %s12, 1
      %p72 = scmp.ne.s32.totalorder %s67, %s69
      %p73 = scmp.eq.s32.totalorder %s12, 0
      %p74 = por %p72, %p73
      %p75 = scmp.ne.s32.totalorder %s67, %s69
      %p76 = scmp.eq.s32.totalorder %s17, 1
      %p77 = por %p75, %p76
      %p78 = scmp.ne.s32.totalorder %s69, %s70
      %p79 = scmp.eq.s32.totalorder %s17, 0
      %p80 = por %p78, %p79
      %p81 = scmp.ne.s32.totalorder %s69, %s70
      %p82 = scmp.eq.s32.totalorder %s18, 1
      %p83 = por %p81, %p82
      %p85 = scmp.ne.s32.totalorder %s70, %s84
      %p86 = scmp.eq.s32.totalorder %s18, 0
      %p87 = por %p85, %p86
      %s88 = ssub.s32 %s12, %s19
      %p89 = scmp.eq.s32.totalorder %s88, 0
      %s91 = sadd.s32 %s90, 1
      %s92 = scalar_select %p89, %s90, %s91
      %p95 = pneg %p89
      %p96 = scmp.eq.s32.totalorder %s12, 1
      %p97 = por %p95, %p96
      %p98 = scmp.ne.s32.totalorder %s90, %s93
      %p99 = scmp.eq.s32.totalorder %s12, 0
      %p100 = por %p98, %p99
      %p101 = scmp.ne.s32.totalorder %s90, %s93
      %p102 = scmp.eq.s32.totalorder %s17, 1
      %p103 = por %p101, %p102
      %p104 = scmp.ne.s32.totalorder %s93, %s94
      %p105 = scmp.eq.s32.totalorder %s17, 0
      %p106 = por %p104, %p105
      %p107 = scmp.ne.s32.totalorder %s93, %s94
      %p108 = scmp.eq.s32.totalorder %s18, 1
      %p109 = por %p107, %p108
      %p111 = scmp.ne.s32.totalorder %s94, %s110
      %p112 = scmp.eq.s32.totalorder %s18, 0
      %p113 = por %p111, %p112
      %p114 = scmp.le.s32.totalorder 1, %s12
      %p115 = scmp.lt.s32.totalorder %s12, 3
      %p116 = pnand %p114, %p115
      %p117 = pneg %p116
      // Predicated region
      $region9: #{tpu_custom_call.1} parent=5 // pred_check
        _
      $region10: #{tpu_custom_call.1} parent=5 // pred_check_branch
        %119 = sbr.rel (%p116) target = $region12
      $region11: #{tpu_custom_call.1} parent=5 // pred_region
        %s120 = ssub.s32 %s12, 1
        // Predicated region
        $region13: #{tpu_custom_call.1} parent=11 // pred_check
          %p121 = pneg %p59
        $region14: #{tpu_custom_call.1} parent=11 // pred_check_branch
          %123 = sbr.rel (%p121) target = $region16
        $region15: #{tpu_custom_call.1} parent=11 // pred_region
          _
        $region16: #{tpu_custom_call.1} parent=11 // pred_fallthru
          _
        // Predicated region
        $region17: #{tpu_custom_call.1} parent=11 // pred_check
          %p124 = pneg %p80
        $region18: #{tpu_custom_call.1} parent=11 // pred_check_branch
          %126 = sbr.rel (%p124) target = $region20
        $region19: #{tpu_custom_call.1} parent=11 // pred_region
          _
        $region20: #{tpu_custom_call.1} parent=11 // pred_fallthru
          _
      $region12: #{tpu_custom_call.1} parent=5 // pred_fallthru
        _
      %p127 = scmp.lt.s32.totalorder %s12, 2
      // Predicated region
      $region21: #{tpu_custom_call.1} parent=5 // pred_check
        %p128 = pneg %p127
      $region22: #{tpu_custom_call.1} parent=5 // pred_check_branch
        %130 = sbr.rel (%p128) target = $region24
      $region23: #{tpu_custom_call.1} parent=5 // pred_region
        // Predicated region
        $region25: #{tpu_custom_call.1} parent=23 // pred_check
          %p131 = pneg %p32
        $region26: #{tpu_custom_call.1} parent=23 // pred_check_branch
          %133 = sbr.rel (%p131) target = $region28
        $region27: #{tpu_custom_call.1} parent=23 // pred_region
          %s134 = smul.u32 2, %s12
          %p135 = scmp.lt.s32.totalorder %s134, 3
          %s136 = scalar_select %p135, %s134, 3
          %s137 = smul.addr %s136, 8
          %s138 = scalar_lea.vmem %s0, %s137
          %s139 = smul.u32 2, %s12
        $region28: #{tpu_custom_call.1} parent=23 // pred_fallthru
          _
      $region24: #{tpu_custom_call.1} parent=5 // pred_fallthru
        _
      %p140 = scmp.le.s32.totalorder 1, %s12
      %p141 = scmp.lt.s32.totalorder %s12, 3
      %p142 = pnand %p140, %p141
      %p143 = pneg %p142
      // Predicated region
      $region29: #{tpu_custom_call.1} parent=5 // pred_check
        _
      $region30: #{tpu_custom_call.1} parent=5 // pred_check_branch
        %145 = sbr.rel (%p142) target = $region32
      $region31: #{tpu_custom_call.1} parent=5 // pred_region
        %s146 = ssub.s32 %s12, 1
        %s147 = smul.u32 2, %s17
        %p148 = scmp.lt.s32.totalorder %s147, 3
        %s149 = scalar_select %p148, %s147, 3
        %s150 = smul.addr %s149, 8
        %s151 = scalar_lea.vmem %s0, %s150
        %p152 = pneg %p38
        %p153 = pneg %p35
        %p154 = pneg %p59
        %p155 = pneg %p56
        %p156 = pneg %p80
        %p157 = pneg %p77
        %p158 = pneg %p106
        %p159 = pneg %p103
        %s160 = sand.u32 %s93, 1
        %s161 = scalar_lea.sflag [#allocation3], %s160
        %s162 = sand.u32 %s93, 1
        %s163 = smul.addr %s162, 16
        %s164 = scalar_lea.vmem [#allocation2], %s163
        %s165 = smul.u32 2, %s17
        %p166 = scmp.lt.s32.totalorder %s165, 3
        %s167 = scalar_select %p166, %s165, 3
        %s168 = smul.addr %s167, 8
        %s169 = scalar_lea.vmem %s0, %s168
        %s170 = smul.u32 2, %s17
        %s171 = smul.u32 2, %s17
        %v173 = vld [vmem:[%s169] sm:$0xff]
        %v174 = vld [vmem:[%s169 + $0x8] sm:$0xff]
        %v175 = vlaneseq
        %v176 = vshrl.u32 %v175, 7
        %v177 = vadd.s32 %v176, 8
        %vm178 = vcmp.lt.s32.totalorder %v176, 0
        %v179 = vsub.s32 0, %v176
        %v180 = vsel %vm178, %v179, %v176
        %v181 = vshrl.u32 %v180, 4
        %v182 = vand.u32 %v180, 15
        %v183 = vsub.s32 0, %v182
        %v184 = vsel %vm178, %v183, %v182
        %vm185 = vcmp.lt.s32.totalorder %v177, 0
        %v186 = vsub.s32 0, %v177
        %v187 = vsel %vm185, %v186, %v177
        %v188 = vshrl.u32 %v187, 4
        %v189 = vand.u32 %v187, 15
        %v190 = vsub.s32 0, %v189
        %v191 = vsel %vm185, %v190, %v189
        %vm192 = vcmp.ne.s32.totalorder %v184, 0
        %vm193 = vcmp.ne.s32.totalorder %v191, 0
        %vm194 = vcmp.lt.s32.totalorder %v184, 0
        %vm195 = vcmp.lt.s32.totalorder %v191, 0
        %vm196 = vmand %vm194, %vm192
        %vm197 = vmand %vm195, %vm193
        %v198 = vadd.s32 %v184, 16
        %v199 = vadd.s32 %v191, 16
        %v200 = vsel %vm196, %v198, %v184
        %v201 = vsel %vm197, %v199, %v191
        %v202 = vrot.slane %v173, 7
        %v203 = vrot.slane %v174, 7
        %vm204 = vcmp.lt.s32.totalorder %v176, 1
        %v205 = vsel %vm204, %v202, %v203
        %v206 = vsel %vm204, %v203, %v202
        %v207 = vadd.s32 %v200, 4294967295
        %v208 = vadd.s32 %v201, 4294967295
        %vm209 = vcmp.ge.s32.totalorder %v207, 0
        %vm210 = vcmp.ge.s32.totalorder %v208, 0
        %vm211 = vcmp.lt.s32.totalorder %v207, 16
        %vm212 = vcmp.lt.s32.totalorder %v208, 16
        %vm213 = vmand %vm209, %vm211
        %vm214 = vmand %vm210, %vm212
        %v215 = vsel %vm213, %v206, 0.0
        %v216 = vsel %vm214, %v205, 0.0
        %v217 = vrot.slane %v173, 1
        %v218 = vrot.slane %v174, 1
        %vm219 = vcmp.lt.s32.totalorder %v176, 7
        %v220 = vsel %vm219, %v217, %v218
        %v221 = vsel %vm219, %v218, %v217
        %v222 = vadd.s32 %v200, 1
        %v223 = vadd.s32 %v201, 1
        %vm224 = vcmp.ge.s32.totalorder %v222, 0
        %vm225 = vcmp.ge.s32.totalorder %v223, 0
        %vm226 = vcmp.lt.s32.totalorder %v222, 16
        %vm227 = vcmp.lt.s32.totalorder %v223, 16
        %vm228 = vmand %vm224, %vm226
        %vm229 = vmand %vm225, %vm227
        %v230 = vsel %vm228, %v220, 0.0
        %v231 = vsel %vm229, %v221, 0.0
        %234 = vrot.lane.b32.xlu0 %v173, 32
        %v235 = vpop.permute.xlu0 %234
        %236 = vrot.lane.b32.xlu0 %v174, 32
        %v237 = vpop.permute.xlu0 %236
        %242 = vrot.lane.b32.xlu0 %v230, 64
        %v243 = vpop.permute.xlu0 %242
        %244 = vrot.lane.b32.xlu0 %v231, 64
        %v245 = vpop.permute.xlu0 %244
        %vm248 = vcmask 261120
        %v249 = vsel %vm248, %v215, %v235
        %v250 = vsel %vm248, %v216, %v237
        %vm251 = vcmask 523264
        %v252 = vsel %vm251, %v249, %v243
        %v253 = vsel %vm251, %v250, %v245
        %v254 = vpack.c.bf16 %v253, %v252
        %v255 = vld [vmem:[%s1] sm:$0xf]
        %v256 = vld [vmem:[%s1 + $0x4] sm:$0xf]
        %v257 = vld [vmem:[%s1 + $0x8] sm:$0xf]
        %v258 = vld [vmem:[%s1 + $0xc] sm:$0xf]
        %v259 = vld [vmem:[%s1 + $0x10] sm:$0xf]
        %v260 = vld [vmem:[%s1 + $0x14] sm:$0xf]
        %v261 = vld [vmem:[%s1 + $0x18] sm:$0xf]
        %v262 = vld [vmem:[%s1 + $0x1c] sm:$0xf]
        %v263 = vld [vmem:[%s1 + $0x20] sm:$0xf]
        %v264 = vld [vmem:[%s1 + $0x24] sm:$0xf]
        %v265 = vld [vmem:[%s1 + $0x28] sm:$0xf]
        %v266 = vld [vmem:[%s1 + $0x2c] sm:$0xf]
        %v267 = vld [vmem:[%s2] sm:$0x1]
        %v269 = vlaneseq
        %v270 = vshrl.u32 %v269, 7
        %v271 = vsub.s32 0, %v270
        %v272 = vrot.slane %v267, %v271
        %v286 = vunpack.c.l.b16 %v255
        %v287 = vunpack.c.l.b16 %v256
        %v288 = vunpack.c.l.b16 %v257
        %v289 = vunpack.c.l.b16 %v258
        %v290 = vunpack.c.l.b16 %v259
        %v291 = vunpack.c.l.b16 %v260
        %v292 = vunpack.c.l.b16 %v261
        %v293 = vunpack.c.l.b16 %v262
        %v294 = vunpack.c.l.b16 %v263
        %v295 = vunpack.c.l.b16 %v264
        %v296 = vunpack.c.l.b16 %v265
        %v297 = vunpack.c.l.b16 %v266
        %v298 = vpack.c.b16 %v287, %v286
        %v299 = vpack.c.b16 %v289, %v288
        %v300 = vpack.c.b16 %v291, %v290
        %v301 = vpack.c.b16 %v293, %v292
        %v302 = vpack.c.b16 %v295, %v294
        %v303 = vpack.c.b16 %v297, %v296
        %vm310 = vcmask 785408
        %v312 = vsel %vm310, %v254, 0
        %314 = vmatprep.subr.bf16.mxu0 0
        %315 = vmatpush1.bf16.msra.mxu0 %v298
        %316 = vmatprep.subr.bf16.mxu0 0
        %317 = vmatpush1.bf16.msra.mxu0 %v299
        %318 = vmatprep.subr.bf16.mxu0 0
        %319 = vmatpush1.bf16.msra.mxu0 %v300
        %320 = vmatprep.subr.bf16.mxu0 0
        %321 = vmatpush1.bf16.msra.mxu0 %v301
        %322 = vmatprep.subr.bf16.mxu0 0
        %323 = vmatpush1.bf16.msra.mxu0 %v302
        %324 = vmatprep.subr.bf16.mxu0 0
        %325 = vmatpush1.bf16.msra.mxu0 %v303
        %326 = vmatprep.subr.bf16.mxu0 0
        %327 = vmatpush1.bf16.msra.mxu0 0
        %328 = vmatprep.subr.bf16.mxu0 0
        %329 = vmatpush1.bf16.msra.mxu0 0
        %330 = vmatprep.subr.bf16.mxu0 0
        %331 = vmatpush1.bf16.msra.mxu0 0
        %332 = vmatprep.subr.bf16.mxu0 0
        %333 = vmatpush1.bf16.msra.mxu0 0
        %334 = vmatprep.subr.bf16.mxu0 0
        %335 = vmatpush1.bf16.msra.mxu0 0
        %336 = vmatprep.subr.bf16.mxu0 0
        %337 = vmatpush1.bf16.msra.mxu0 0
        %338 = vmatprep.subr.bf16.mxu0 0
        %339 = vmatpush1.bf16.msra.mxu0 0
        %340 = vmatprep.subr.bf16.mxu0 0
        %341 = vmatpush1.bf16.msra.mxu0 0
        %342 = vmatprep.subr.bf16.mxu0 0
        %343 = vmatpush1.bf16.msra.mxu0 0
        %344 = vmatprep.subr.bf16.mxu0 0
        %345 = vmatpush1.bf16.msra.mxu0 0
        %346 = vmatprep.mubr.bf16.mxu0 0
        %347 = vmatmul.mubr.bf16.gmra.mrb[0].mxu0 %v312
        %v348 = vpop.f32.mrb[0].mxu0
        %v349 = vadd.f32 %v272, %v348
        %v350 = vpop.f32.mrb[0].mxu0
        %v351 = vpop.f32.mrb[0].mxu0
        %v352 = vadd.f32 %v272, %v351
        %v353 = vpop.f32.mrb[0].mxu0
        %354 = vdwg.mxu0
        %v355 = vmul.f32 %v349, 0.5
        %v356 = vmul.f32 %v352, 0.5
        %v357 = vmul.f32 %v349, 0.7978846
        %v358 = vmul.f32 %v352, 0.7978846
        %v359 = vmul.f32 %v349, 0.044715
        %v360 = vmul.f32 %v352, 0.044715
        %v361 = vmul.f32 %v359, %v349
        %v362 = vmul.f32 %v360, %v352
        %v363 = vadd.f32 %v361, 1.0
        %v364 = vadd.f32 %v362, 1.0
        %v365 = vmul.f32 %v357, %v363
        %v366 = vmul.f32 %v358, %v364
        %v367 = vtanh.pop %v365
        %v368 = vtanh.pop %v366
        %v369 = vadd.f32 %v367, 1.0
        %v370 = vadd.f32 %v368, 1.0
        %v371 = vmul.f32 %v355, %v369
        %v372 = vmul.f32 %v356, %v370
        %373 = vst.msk [vmem:[%s164] sm:$0xff] %vm251, %v371
        %374 = vst.msk [vmem:[%s164 + $0x8] sm:$0xff] %vm251, %v372
        %s375 = sand.u32 %s93, 1
        %s376 = scalar_lea.sflag [#allocation3], %s375
        %s377 = sand.u32 %s93, 1
        %s378 = smul.addr %s377, 16
        %s379 = scalar_lea.vmem [#allocation2], %s378
        // Predicated region
        $region33: #{tpu_custom_call.1} parent=31 // pred_check
          %p380 = pneg %p103
        $region34: #{tpu_custom_call.1} parent=31 // pred_check_branch
          %382 = sbr.rel (%p380) target = $region36
        $region35: #{tpu_custom_call.1} parent=31 // pred_region
          %s383 = smul.u32 2, %s17
          %s385 = ssub.s32 256, 256
          %386 = vsyncadd %s376, %s385
          %s387 = smul.addr %s383, 128
          %s388 = scalar_lea.hbm %s3, %s387
          %s389 = sshll.u32 %s379, 4
          %s390 = int_to_ptr.vmem [resolvable:$true] %s389
          %395 = dma.vmem_to_hbm [thread:$0]  %s390, 256, %s388, %s376, 128, 128, 8
        $region36: #{tpu_custom_call.1} parent=31 // pred_fallthru
          _
      $region32: #{tpu_custom_call.1} parent=5 // pred_fallthru
        _
      %p396 = scmp.le.s32.totalorder 2, %s12
      // Predicated region
      $region37: #{tpu_custom_call.1} parent=5 // pred_check
        %p397 = pneg %p396
      $region38: #{tpu_custom_call.1} parent=5 // pred_check_branch
        %399 = sbr.rel (%p397) target = $region40
      $region39: #{tpu_custom_call.1} parent=5 // pred_region
        %s400 = ssub.s32 %s12, 2
        // Predicated region
        $region41: #{tpu_custom_call.1} parent=39 // pred_check
          %p401 = pneg %p109
        $region42: #{tpu_custom_call.1} parent=39 // pred_check_branch
          %403 = sbr.rel (%p401) target = $region44
        $region43: #{tpu_custom_call.1} parent=39 // pred_region
          %s404 = sand.u32 %s94, 1
          %s405 = scalar_lea.sflag [#allocation3], %s404
          %s406 = sand.u32 %s94, 1
          %s407 = smul.addr %s406, 16
          %s408 = scalar_lea.vmem [#allocation2], %s407
          %409 = dma.done %s405, 256
        $region44: #{tpu_custom_call.1} parent=39 // pred_fallthru
          _
      $region40: #{tpu_custom_call.1} parent=5 // pred_fallthru
        _
    $region6: #{tpu_custom_call.1} parent=1 // loop_footer
      %s16 = sadd.s32 1, %s12
    $region7: #{tpu_custom_call.1} parent=1 // loop_footer_branch
      %11 = sbr.rel target = $region3
    $region8: #{tpu_custom_call.1} parent=1 // loop_exit
      _
    %410 = vsyncpa [#allocation3], 1
    %s411 = scalar_lea.sflag [#allocation3], 1
    %412 = vsyncpa %s411, 1

</llo_original>
